<compile_context>
chip_gen: v7x
topology: tpu7x:2x2x1
jax: 0.10.0
libtpu: 0.0.40
codegen_flags: <defaults>
</compile_context>

<pallas_src>
import jax
import jax.numpy as jnp
from jax.experimental import pallas as pl
from jax.experimental.pallas import tpu as pltpu

_LANE = 128
_N_LAYERS = 4
_W_ROWS = _N_LAYERS * _LANE        # 512 rows of (zero-padded) weights
_SLAB_ROWS = _W_ROWS + 8           # + one aligned (8,128) tile holding biases
_SIZES = [(20, 64), (64, 32), (32, 16), (16, 5)]
_F_IN = 20
_F_OUT = 5
_OUT_LANES = 8                     # aligned narrow output block


def _round_up(n, m):
    return ((n + m - 1) // m) * m


def mlp_kernel(x_ref, p_ref, o_ref, xpad_ref):
    """One (tile_b, 20) row tile through the full padded MLP.

    p_ref layout (single lane-padded parameter slab):
      rows [l*128, (l+1)*128) : weight of layer l, zero-padded to (128, 128)
      row  512 + l            : bias of layer l, zero-padded to 128 lanes
    xpad_ref: (tile_b, 128) VMEM scratch used to lane-pad x in-kernel.
    """
    cdt = p_ref.dtype                                        # compute dtype
    bias = p_ref[pl.ds(_W_ROWS, 8), :].astype(jnp.float32)   # (8, 128), f32

    # Lane-pad x (tile_b, 20) -> (tile_b, 128) entirely in VMEM/vregs.
    # Re-zero every step: with a "parallel" batch axis each core starts at a
    # different grid index, so a program_id(0)==0 guard would be unsafe.
    xpad_ref[...] = jnp.zeros_like(xpad_ref)
    xpad_ref[:, :_F_IN] = x_ref[...].astype(cdt)
    h = xpad_ref[...]                                        # (tile_b, 128) cdt

    for l in range(_N_LAYERS):
        w = p_ref[pl.ds(l * _LANE, _LANE), :]                # static (128,128)
        acc = jnp.dot(h, w, preferred_element_type=jnp.float32)
        acc = acc + bias[l:l + 1, :]                         # f32 bias add
        if l == _N_LAYERS - 1:
            h = acc                                          # f32 final layer
        else:
            h = jnp.maximum(acc, 0.0).astype(cdt)            # f32 ReLU -> cdt

    o_ref[...] = h[:, :_OUT_LANES].astype(o_ref.dtype)


def pack_params(params, dtype=jnp.bfloat16):
    """Pack w1..w4 / b1..b4 into one lane-padded (520, 128) slab."""
    slab = jnp.zeros((_SLAB_ROWS, _LANE), jnp.float32)
    for l in range(_N_LAYERS):
        w = params[f"w{l + 1}"]          # (in, out)
        b = params[f"b{l + 1}"]          # (1, out)
        fi, fo = w.shape
        slab = slab.at[l * _LANE:l * _LANE + fi, :fo].set(w)
        slab = slab.at[_W_ROWS + l, :fo].set(b[0])
    return slab.astype(dtype)


def _choose_tile_b(B, requested):
    """Multiple of 8, <= requested; >= 2 grid steps when the batch allows it."""
    b8 = _round_up(max(B, 1), 8)
    tile = _round_up(min(requested, b8), 8)
    if b8 // tile < 2 and b8 >= 16:
        # v7x has 2 TensorCores; the "parallel" batch axis is what shards
        # across them, so make sure there are at least 2 grid steps.
        tile = _round_up((b8 + 1) // 2, 8)
    return tile


def functional_model_forward(x, packed, *, tile_b=512):
    """x: (B, 20). packed: (520, 128) slab from pack_params. -> (B, 5) f32."""
    B, fin = x.shape
    assert fin == _F_IN, fin
    cdt = packed.dtype

    tile_b = _choose_tile_b(B, tile_b)
    Bp = _round_up(B, tile_b)
    grid = (Bp // tile_b,)

    xs = x.astype(cdt)
    if Bp != B:
        # Row-pad with zeros only (no lane padding); padded rows are sliced
        # away below and never feed any reduction.
        xs = jnp.zeros((Bp, _F_IN), cdt).at[:B].set(xs)

    flops = 2 * Bp * _N_LAYERS * _LANE * _LANE
    bytes_accessed = int(xs.size * xs.dtype.itemsize
                         + packed.size * packed.dtype.itemsize
                         + Bp * _OUT_LANES * 4)

    out = pl.pallas_call(
        mlp_kernel,
        out_shape=jax.ShapeDtypeStruct((Bp, _OUT_LANES), jnp.float32),
        grid=grid,
        in_specs=[
            pl.BlockSpec((tile_b, _F_IN), lambda i: (i, 0)),        # x row tile
            pl.BlockSpec((_SLAB_ROWS, _LANE), lambda i: (0, 0)),    # resident params
        ],
        out_specs=pl.BlockSpec((tile_b, _OUT_LANES), lambda i: (i, 0)),
        scratch_shapes=[pltpu.VMEM((tile_b, _LANE), cdt)],          # x lane-pad buf
        compiler_params=pltpu.CompilerParams(
            dimension_semantics=("parallel",),
        ),
        cost_estimate=pl.CostEstimate(
            flops=flops, transcendentals=0, bytes_accessed=bytes_accessed),
    )(xs, packed)

    return out[:B, :_F_OUT]


def init_params(key):
    """PyTorch nn.Linear default init: U(-1/sqrt(fan_in), 1/sqrt(fan_in))."""
    params = {}
    keys = jax.random.split(key, 2 * len(_SIZES))
    for i, (fan_in, fan_out) in enumerate(_SIZES):
        bound = 1.0 / (fan_in ** 0.5)
        params[f"w{i + 1}"] = jax.random.uniform(
            keys[2 * i], (fan_in, fan_out), minval=-bound, maxval=bound,
            dtype=jnp.float32)
        params[f"b{i + 1}"] = jax.random.uniform(
            keys[2 * i + 1], (1, fan_out), minval=-bound, maxval=bound,
            dtype=jnp.float32)
    return params


def reference_forward(x, params):
    h = jnp.maximum(x @ params["w1"] + params["b1"], 0.0)
    h = jnp.maximum(h @ params["w2"] + params["b2"], 0.0)
    h = jnp.maximum(h @ params["w3"] + params["b3"], 0.0)
    return h @ params["w4"] + params["b4"]


def reference_forward_cast(x, params, cdt):
    """Reference mirroring the kernel's dtype handling for cdt weights."""
    def mm(a, w):
        return jnp.dot(a.astype(cdt), w.astype(cdt),
                       preferred_element_type=jnp.float32)
    def bias(name):
        return params[name].astype(cdt).astype(jnp.float32)
    h = jnp.maximum(mm(x, params["w1"]) + bias("b1"), 0.0)
    h = jnp.maximum(mm(h, params["w2"]) + bias("b2"), 0.0)
    h = jnp.maximum(mm(h, params["w3"]) + bias("b3"), 0.0)
    return mm(h, params["w4"]) + bias("b4")


if __name__ == "__main__":
    key = jax.random.PRNGKey(0)
    pkey, xkey = jax.random.split(key)
    params = init_params(pkey)

    B = 64
    x = jax.random.normal(xkey, (B, _F_IN), dtype=jnp.float32)
    ref_f32 = reference_forward(x, params)

    # Default fast path: bf16 x / weight stream, f32 accumulation.
    # (B=64 auto-splits into 2 grid steps -> both v7x TensorCores get work.)
    packed_bf16 = pack_params(params)                 # bf16 by default
    out_bf = jax.block_until_ready(functional_model_forward(x, packed_bf16))
    assert out_bf.shape == (B, _F_OUT), out_bf.shape
    ref_bf = reference_forward_cast(x, params, jnp.bfloat16)
    assert jnp.allclose(out_bf, ref_bf, atol=2e-3, rtol=2e-3), \
        f"bf16 (dtype-matched) max abs err {jnp.max(jnp.abs(out_bf - ref_bf))}"
    assert jnp.allclose(out_bf, ref_f32, atol=1e-1, rtol=1e-1), \
        f"bf16 vs f32 reference max abs err {jnp.max(jnp.abs(out_bf - ref_f32))}"

    # f32 slab = debug path; should match the pure-f32 reference tightly.
    packed_f32 = pack_params(params, jnp.float32)
    out_f32 = jax.block_until_ready(functional_model_forward(x, packed_f32))
    assert jnp.allclose(out_f32, ref_f32, atol=1e-4, rtol=1e-4), \
        f"f32 max abs err {jnp.max(jnp.abs(out_f32 - ref_f32))}"

    # Odd / small batch exercises the row-padding path (padded to 8 rows).
    x2 = x[:7]
    out2 = jax.block_until_ready(functional_model_forward(x2, packed_f32))
    assert out2.shape == (7, _F_OUT), out2.shape
    assert jnp.allclose(out2, ref_f32[:7], atol=1e-4, rtol=1e-4), \
        f"padded-batch max abs err {jnp.max(jnp.abs(out2 - ref_f32[:7]))}"

    print("KERNEL_OK")
</pallas_src>

<mosaic_0001>
module attributes {stable_mosaic.version = 11 : i64} {
  func.func @mlp_kernel(%arg0: i32, %arg1: memref<32x20xbf16, #tpu.memory_space<vmem>>, %arg2: memref<520x128xbf16, #tpu.memory_space<vmem>>, %arg3: memref<32x8xf32, #tpu.memory_space<vmem>>, %arg4: memref<32x128xbf16, #tpu.memory_space<vmem>>) attributes {dimension_semantics = [#tpu.dimension_semantics<parallel>], iteration_bounds = array<i64: 2>, scalar_prefetch = 0 : i64, scratch_operands = 1 : i64, tpu.core_type = #tpu.core_type<tc>, window_params = [{transform_indices = @transform_0, window_bounds = array<i64: 32, 20>}, {pipeline_mode = #tpu.pipeline_mode<synchronous>, transform_indices = @transform_1, window_bounds = array<i64: 520, 128>}, {transform_indices = @transform_2, window_bounds = array<i64: 32, 8>}]} {
    %c512 = arith.constant 512 : index
    %c0 = arith.constant 0 : index
    %0 = vector.load %arg2[%c512, %c0] : memref<520x128xbf16, #tpu.memory_space<vmem>>, vector<8x128xbf16>
    %1 = arith.extf %0 : vector<8x128xbf16> to vector<8x128xf32>
    %cst = arith.constant 0.000000e+00 : bf16
    %2 = vector.broadcast %cst : bf16 to vector<32x128xbf16>
    %c0_0 = arith.constant 0 : index
    %c0_1 = arith.constant 0 : index
    %3 = vector.load %arg4[%c0_0, %c0_1] : memref<32x128xbf16, #tpu.memory_space<vmem>>, vector<32x128xbf16>
    tpu.vector_store %arg4[%c0_0, %c0_1], %2 {strides = array<i32>} : memref<32x128xbf16, #tpu.memory_space<vmem>>, vector<32x128xbf16>,
    %c0_2 = arith.constant 0 : index
    %c0_3 = arith.constant 0 : index
    %4 = vector.load %arg1[%c0_2, %c0_3] : memref<32x20xbf16, #tpu.memory_space<vmem>>, vector<32x20xbf16>
    %c0_4 = arith.constant 0 : index
    %c0_5 = arith.constant 0 : index
    %5 = vector.load %arg4[%c0_4, %c0_5] : memref<32x128xbf16, #tpu.memory_space<vmem>>, vector<32x20xbf16>
    tpu.vector_store %arg4[%c0_4, %c0_5], %4 {strides = array<i32>} : memref<32x128xbf16, #tpu.memory_space<vmem>>, vector<32x20xbf16>,
    %c0_6 = arith.constant 0 : index
    %c0_7 = arith.constant 0 : index
    %6 = vector.load %arg4[%c0_6, %c0_7] : memref<32x128xbf16, #tpu.memory_space<vmem>>, vector<32x128xbf16>
    %c0_8 = arith.constant 0 : index
    %c0_9 = arith.constant 0 : index
    %7 = vector.load %arg2[%c0_8, %c0_9] : memref<520x128xbf16, #tpu.memory_space<vmem>>, vector<128x128xbf16>
    %cst_10 = arith.constant dense<0.000000e+00> : vector<32x128xf32>
    %8 = tpu.matmul %6, %7, %cst_10 {dimension_numbers = #tpu.dot_dimension_numbers<[1], [0], [0], [1], [0, 0, 1, 1], [], []>} : vector<32x128xbf16>, vector<128x128xbf16>, vector<32x128xf32> -> vector<32x128xf32>
    %9 = vector.extract_strided_slice %1 {offsets = [0, 0], sizes = [1, 128], strides = [1, 1]} : vector<8x128xf32> to vector<1x128xf32>
    %10 = vector.broadcast %9 : vector<1x128xf32> to vector<32x128xf32>
    %11 = arith.addf %8, %10 : vector<32x128xf32>
    %cst_11 = arith.constant 0.000000e+00 : f32
    %12 = vector.broadcast %cst_11 : f32 to vector<32x128xf32>
    %13 = arith.maximumf %11, %12 : vector<32x128xf32>
    %14 = arith.truncf %13 : vector<32x128xf32> to vector<32x128xbf16>
    %c128 = arith.constant 128 : index
    %c0_12 = arith.constant 0 : index
    %15 = vector.load %arg2[%c128, %c0_12] : memref<520x128xbf16, #tpu.memory_space<vmem>>, vector<128x128xbf16>
    %cst_13 = arith.constant dense<0.000000e+00> : vector<32x128xf32>
    %16 = tpu.matmul %14, %15, %cst_13 {dimension_numbers = #tpu.dot_dimension_numbers<[1], [0], [0], [1], [0, 0, 1, 1], [], []>} : vector<32x128xbf16>, vector<128x128xbf16>, vector<32x128xf32> -> vector<32x128xf32>
    %17 = vector.extract_strided_slice %1 {offsets = [1, 0], sizes = [1, 128], strides = [1, 1]} : vector<8x128xf32> to vector<1x128xf32>
    %18 = vector.broadcast %17 : vector<1x128xf32> to vector<32x128xf32>
    %19 = arith.addf %16, %18 : vector<32x128xf32>
    %cst_14 = arith.constant 0.000000e+00 : f32
    %20 = vector.broadcast %cst_14 : f32 to vector<32x128xf32>
    %21 = arith.maximumf %19, %20 : vector<32x128xf32>
    %22 = arith.truncf %21 : vector<32x128xf32> to vector<32x128xbf16>
    %c256 = arith.constant 256 : index
    %c0_15 = arith.constant 0 : index
    %23 = vector.load %arg2[%c256, %c0_15] : memref<520x128xbf16, #tpu.memory_space<vmem>>, vector<128x128xbf16>
    %cst_16 = arith.constant dense<0.000000e+00> : vector<32x128xf32>
    %24 = tpu.matmul %22, %23, %cst_16 {dimension_numbers = #tpu.dot_dimension_numbers<[1], [0], [0], [1], [0, 0, 1, 1], [], []>} : vector<32x128xbf16>, vector<128x128xbf16>, vector<32x128xf32> -> vector<32x128xf32>
    %25 = vector.extract_strided_slice %1 {offsets = [2, 0], sizes = [1, 128], strides = [1, 1]} : vector<8x128xf32> to vector<1x128xf32>
    %26 = vector.broadcast %25 : vector<1x128xf32> to vector<32x128xf32>
    %27 = arith.addf %24, %26 : vector<32x128xf32>
    %cst_17 = arith.constant 0.000000e+00 : f32
    %28 = vector.broadcast %cst_17 : f32 to vector<32x128xf32>
    %29 = arith.maximumf %27, %28 : vector<32x128xf32>
    %30 = arith.truncf %29 : vector<32x128xf32> to vector<32x128xbf16>
    %c384 = arith.constant 384 : index
    %c0_18 = arith.constant 0 : index
    %31 = vector.load %arg2[%c384, %c0_18] : memref<520x128xbf16, #tpu.memory_space<vmem>>, vector<128x128xbf16>
    %cst_19 = arith.constant dense<0.000000e+00> : vector<32x128xf32>
    %32 = tpu.matmul %30, %31, %cst_19 {dimension_numbers = #tpu.dot_dimension_numbers<[1], [0], [0], [1], [0, 0, 1, 1], [], []>} : vector<32x128xbf16>, vector<128x128xbf16>, vector<32x128xf32> -> vector<32x128xf32>
    %33 = vector.extract_strided_slice %1 {offsets = [3, 0], sizes = [1, 128], strides = [1, 1]} : vector<8x128xf32> to vector<1x128xf32>
    %34 = vector.broadcast %33 : vector<1x128xf32> to vector<32x128xf32>
    %35 = arith.addf %32, %34 : vector<32x128xf32>
    %36 = vector.extract_strided_slice %35 {offsets = [0, 0], sizes = [32, 8], strides = [1, 1]} : vector<32x128xf32> to vector<32x8xf32>
    %c0_20 = arith.constant 0 : index
    %c0_21 = arith.constant 0 : index
    %37 = vector.load %arg3[%c0_20, %c0_21] : memref<32x8xf32, #tpu.memory_space<vmem>>, vector<32x8xf32>
    tpu.vector_store %arg3[%c0_20, %c0_21], %36 {strides = array<i32>} : memref<32x8xf32, #tpu.memory_space<vmem>>, vector<32x8xf32>,
    return
  }
  func.func @transform_0(%arg0: i32) -> (i32, i32) {
    %c0_i32 = arith.constant 0 : i32
    %c0_i32_0 = arith.constant 0 : i32
    return %arg0, %c0_i32 : i32, i32
  }
  func.func @transform_1(%arg0: i32) -> (i32, i32) {
    %c0_i32 = arith.constant 0 : i32
    %c0_i32_0 = arith.constant 0 : i32
    %c0_i32_1 = arith.constant 0 : i32
    return %c0_i32, %c0_i32_0 : i32, i32
  }
  func.func @transform_2(%arg0: i32) -> (i32, i32) {
    %c0_i32 = arith.constant 0 : i32
    %c0_i32_0 = arith.constant 0 : i32
    return %arg0, %c0_i32 : i32, i32
  }
}

</mosaic_0001>

<llo_original>
// kernel: tpu_custom_call.1
$region0: #{tpu_custom_call.1}
  #allocation0 [shape = 'u32[]', space=smem, size = 0x4, offset = 0x4, fixed_abs, tag = 'smem constant byte address 0x4 - core index']
  #allocation1 [shape = 'u32[144,128]{1,0:T(1,128)}', space=vmem, size = 0x12000, scoped, tag = 'internal scratch']
  #allocation2 [shape = 'bf16[32,128]{1,0:T(16,128)(2,1)}', space=vmem, size = 0x2000, scoped, tag = 'scratch operand']
  %s0 = inlined_call_operand.vmem [shape: bf16[64,20], index: 0, kind: input, shape index: {}]
  %s1 = inlined_call_operand.hbm [shape: bf16[520,128], index: 1, kind: input, shape index: {}]
  %s2 = inlined_call_operand.vmem [shape: f32[64,8], index: 2, kind: output, shape index: {}]
  %s3 = sld [smem:[#allocation0]]
  $region45: #{tpu_custom_call.1} parent=0
    _
  %s5 = ssub.s32 1, %s3
  %s6 = scalar_select 0, %s5, %s3
  $region1: #{tpu_custom_call.1} parent=0
    #allocation3 [shape = 'u8[133120]{0}', space=vmem, size = 0x20800, scoped, tag = 'input window, operand 1, single buffered']
    #allocation4 [shape = 's32[2]{0}', space=sflag, size = 0x8, scoped, tag = 'scoped memory for tpu_custom_call.1']
    %7 = vsyncpa [#allocation4], 0
    loop: start=0, step=1, limit=4
    $region2: #{tpu_custom_call.1} parent=1 // loop_pre_header
      _
    $region3: #{tpu_custom_call.1} parent=1 // loop_header
      %s9 = sphi 0, %s13
      %p10 = scmp.ge.s32.totalorder %s9, 4
      %s19 = sphi 0, %s21
      %s22 = sphi 0, %s19
      %s23 = sphi 0, %s22
      %s39 = sphi 0, %s23
      %s43 = sphi 0, %s43
      %s45 = sphi 0, %s43
      %s46 = sphi 0, %s45
      %s60 = sphi 0, %s46
      %s66 = sphi 0, %s68
      %s69 = sphi 0, %s66
      %s70 = sphi 0, %s69
      %s86 = sphi 0, %s70
    $region4: #{tpu_custom_call.1} parent=1 // loop_header_branch
      %12 = sbr.rel (%p10) target = $region8
    $region5: #{tpu_custom_call.1} parent=1 // loop_body
      %s14 = ssub.s32 %s9, 1
      %s15 = ssub.s32 %s9, 2
      %s16 = sadd.s32 %s9, 1
      %s17 = ssub.s32 %s9, %s16
      %p18 = scmp.eq.s32.totalorder %s17, 0
      %s20 = sadd.s32 %s19, 1
      %s21 = scalar_select %p18, %s19, %s20
      %p24 = pneg %p18
      %p25 = scmp.eq.s32.totalorder %s9, 1
      %p26 = por %p24, %p25
      %p27 = scmp.ne.s32.totalorder %s19, %s22
      %p28 = scmp.eq.s32.totalorder %s9, 0
      %p29 = por %p27, %p28
      %p30 = scmp.ne.s32.totalorder %s19, %s22
      %p31 = scmp.eq.s32.totalorder %s14, 1
      %p32 = por %p30, %p31
      %p33 = scmp.ne.s32.totalorder %s22, %s23
      %p34 = scmp.eq.s32.totalorder %s14, 0
      %p35 = por %p33, %p34
      %p36 = scmp.ne.s32.totalorder %s22, %s23
      %p37 = scmp.eq.s32.totalorder %s15, 1
      %p38 = por %p36, %p37
      %p40 = scmp.ne.s32.totalorder %s23, %s39
      %p41 = scmp.eq.s32.totalorder %s15, 0
      %p42 = por %p40, %p41
      %s44 = sadd.s32 %s43, 1
      %p47 = scmp.eq.s32.totalorder %s9, 1
      %p48 = scmp.ne.s32.totalorder %s43, %s45
      %p49 = scmp.eq.s32.totalorder %s9, 0
      %p50 = por %p48, %p49
      %p51 = scmp.ne.s32.totalorder %s43, %s45
      %p52 = scmp.eq.s32.totalorder %s14, 1
      %p53 = por %p51, %p52
      %p54 = scmp.ne.s32.totalorder %s45, %s46
      %p55 = scmp.eq.s32.totalorder %s14, 0
      %p56 = por %p54, %p55
      %p57 = scmp.ne.s32.totalorder %s45, %s46
      %p58 = scmp.eq.s32.totalorder %s15, 1
      %p59 = por %p57, %p58
      %p61 = scmp.ne.s32.totalorder %s46, %s60
      %p62 = scmp.eq.s32.totalorder %s15, 0
      %p63 = por %p61, %p62
      %s64 = ssub.s32 %s9, %s16
      %p65 = scmp.eq.s32.totalorder %s64, 0
      %s67 = sadd.s32 %s66, 1
      %s68 = scalar_select %p65, %s66, %s67
      %p71 = pneg %p65
      %p72 = scmp.eq.s32.totalorder %s9, 1
      %p73 = por %p71, %p72
      %p74 = scmp.ne.s32.totalorder %s66, %s69
      %p75 = scmp.eq.s32.totalorder %s9, 0
      %p76 = por %p74, %p75
      %p77 = scmp.ne.s32.totalorder %s66, %s69
      %p78 = scmp.eq.s32.totalorder %s14, 1
      %p79 = por %p77, %p78
      %p80 = scmp.ne.s32.totalorder %s69, %s70
      %p81 = scmp.eq.s32.totalorder %s14, 0
      %p82 = por %p80, %p81
      %p83 = scmp.ne.s32.totalorder %s69, %s70
      %p84 = scmp.eq.s32.totalorder %s15, 1
      %p85 = por %p83, %p84
      %p87 = scmp.ne.s32.totalorder %s70, %s86
      %p88 = scmp.eq.s32.totalorder %s15, 0
      %p89 = por %p87, %p88
      %p90 = scmp.le.s32.totalorder 1, %s9
      %p91 = scmp.lt.s32.totalorder %s9, 3
      %p92 = pnand %p90, %p91
      %p93 = pneg %p92
      // Predicated region
      $region9: #{tpu_custom_call.1} parent=5 // pred_check
        _
      $region10: #{tpu_custom_call.1} parent=5 // pred_check_branch
        %95 = sbr.rel (%p92) target = $region12
      $region11: #{tpu_custom_call.1} parent=5 // pred_region
        %s96 = ssub.s32 %s9, 1
        // Predicated region
        $region13: #{tpu_custom_call.1} parent=11 // pred_check
          %p97 = pneg %p56
        $region14: #{tpu_custom_call.1} parent=11 // pred_check_branch
          %99 = sbr.rel (%p97) target = $region16
        $region15: #{tpu_custom_call.1} parent=11 // pred_region
          %s101 = ssub.s32 4160, 4160
          %102 = vsyncadd [#allocation4], %s101
          %s103 = sshll.u32 [#allocation3], 4
          %s104 = int_to_ptr.vmem [resolvable:$true] %s103
          %109 = dma.hbm_to_vmem [thread:$0]  %s1, 4160, %s104, [#allocation4], 64, 64, 4
        $region16: #{tpu_custom_call.1} parent=11 // pred_fallthru
          _
      $region12: #{tpu_custom_call.1} parent=5 // pred_fallthru
        _
      %p110 = scmp.lt.s32.totalorder %s9, 2
      // Predicated region
      $region17: #{tpu_custom_call.1} parent=5 // pred_check
        %p111 = pneg %p110
      $region18: #{tpu_custom_call.1} parent=5 // pred_check_branch
        %113 = sbr.rel (%p111) target = $region20
      $region19: #{tpu_custom_call.1} parent=5 // pred_region
        // Predicated region
        $region21: #{tpu_custom_call.1} parent=19 // pred_check
          %p114 = pneg %p29
        $region22: #{tpu_custom_call.1} parent=19 // pred_check_branch
          %116 = sbr.rel (%p114) target = $region24
        $region23: #{tpu_custom_call.1} parent=19 // pred_region
          %s117 = smul.u32 4, %s9
          %p118 = scmp.lt.s32.totalorder %s117, 7
          %s119 = scalar_select %p118, %s117, 7
          %s120 = smul.addr %s119, 4
          %s121 = scalar_lea.vmem %s0, %s120
          %s122 = smul.u32 4, %s9
        $region24: #{tpu_custom_call.1} parent=19 // pred_fallthru
          _
      $region20: #{tpu_custom_call.1} parent=5 // pred_fallthru
        _
      %p123 = scmp.le.s32.totalorder 1, %s9
      %p124 = scmp.lt.s32.totalorder %s9, 3
      %p125 = pnand %p123, %p124
      %p126 = pneg %p125
      // Predicated region
      $region25: #{tpu_custom_call.1} parent=5 // pred_check
        _
      $region26: #{tpu_custom_call.1} parent=5 // pred_check_branch
        %128 = sbr.rel (%p125) target = $region28
      $region27: #{tpu_custom_call.1} parent=5 // pred_region
        %s129 = ssub.s32 %s9, 1
        // Predicated region
        $region29: #{tpu_custom_call.1} parent=27 // pred_check
          %p130 = pneg %p56
        $region30: #{tpu_custom_call.1} parent=27 // pred_check_branch
          %132 = sbr.rel (%p130) target = $region32
        $region31: #{tpu_custom_call.1} parent=27 // pred_region
          %133 = dma.done [#allocation4], 4160
        $region32: #{tpu_custom_call.1} parent=27 // pred_fallthru
          _
        %s134 = smul.u32 4, %s14
        %p135 = scmp.lt.s32.totalorder %s134, 7
        %s136 = scalar_select %p135, %s134, 7
        %s137 = smul.addr %s136, 4
        %s138 = scalar_lea.vmem %s0, %s137
        %p139 = pneg %p35
        %p140 = pneg %p32
        %p141 = pneg %p56
        %p142 = pneg %p53
        %p143 = pneg %p82
        %p144 = pneg %p79
        %s145 = smul.u32 4, %s14
        %p146 = scmp.lt.s32.totalorder %s145, 7
        %s147 = scalar_select %p146, %s145, 7
        %s148 = smul.addr %s147, 8
        %s149 = scalar_lea.vmem %s2, %s148
        %s150 = smul.u32 4, %s14
        %p151 = scmp.lt.s32.totalorder %s150, 7
        %s152 = scalar_select %p151, %s150, 7
        %s153 = smul.addr %s152, 4
        %s154 = scalar_lea.vmem %s0, %s153
        %s155 = smul.u32 4, %s14
        %s156 = smul.u32 4, %s14
        %p157 = scmp.lt.s32.totalorder %s156, 7
        %s158 = scalar_select %p157, %s156, 7
        %s159 = smul.addr %s158, 8
        %s160 = scalar_lea.vmem %s2, %s159
        %s161 = smul.u32 4, %s14
        %v163 = vld [vmem:[#allocation3 + $0x100] sm:$0xf]
        %v164 = vunpack.c.l.bf16 %v163
        %165 = vst [vmem:[#allocation2] sm:$0xff] 0
        %166 = vst [vmem:[#allocation2 + $0x8] sm:$0xff] 0
        %v167 = vld [vmem:[%s154] sm:$0xf]
        %v168 = vld [vmem:[%s154 + $0x4] sm:$0xf]
        %v169 = vld [vmem:[%s154 + $0x8] sm:$0xf]
        %v170 = vld [vmem:[%s154 + $0xc] sm:$0xf]
        %v175 = vunpack.c.l.b16 %v167
        %v176 = vunpack.c.l.b16 %v168
        %v177 = vunpack.c.l.b16 %v169
        %v178 = vunpack.c.l.b16 %v170
        %v179 = vpack.c.b16 %v176, %v175
        %v180 = vpack.c.b16 %v178, %v177
        %vm183 = vcmask 162816
        %184 = vst.msk [vmem:[#allocation2] sm:$0xff] %vm183, %v179
        %185 = vst.msk [vmem:[#allocation2 + $0x8] sm:$0xff] %vm183, %v180
        %v186 = vld [vmem:[#allocation2] sm:$0xff]
        %v187 = vld [vmem:[#allocation2 + $0x8] sm:$0xff]
        %v188 = vld [vmem:[#allocation3] sm:$0xf]
        %v189 = vld [vmem:[#allocation3 + $0x4] sm:$0xf]
        %v190 = vld [vmem:[#allocation3 + $0x8] sm:$0xf]
        %v191 = vld [vmem:[#allocation3 + $0xc] sm:$0xf]
        %v192 = vld [vmem:[#allocation3 + $0x10] sm:$0xf]
        %v193 = vld [vmem:[#allocation3 + $0x14] sm:$0xf]
        %v194 = vld [vmem:[#allocation3 + $0x18] sm:$0xf]
        %v195 = vld [vmem:[#allocation3 + $0x1c] sm:$0xf]
        %v196 = vld [vmem:[#allocation3 + $0x20] sm:$0xf]
        %v197 = vld [vmem:[#allocation3 + $0x24] sm:$0xf]
        %v198 = vld [vmem:[#allocation3 + $0x28] sm:$0xf]
        %v199 = vld [vmem:[#allocation3 + $0x2c] sm:$0xf]
        %v200 = vld [vmem:[#allocation3 + $0x30] sm:$0xf]
        %v201 = vld [vmem:[#allocation3 + $0x34] sm:$0xf]
        %v202 = vld [vmem:[#allocation3 + $0x38] sm:$0xf]
        %v203 = vld [vmem:[#allocation3 + $0x3c] sm:$0xf]
        %v204 = vlaneseq
        %v205 = vshrl.u32 %v204, 7
        %v206 = vsub.s32 0, %v205
        %v207 = vrot.slane %v164, %v206
        %v224 = vunpack.c.l.b16 %v188
        %v225 = vunpack.c.l.b16 %v189
        %v226 = vunpack.c.l.b16 %v190
        %v227 = vunpack.c.l.b16 %v191
        %v228 = vunpack.c.l.b16 %v192
        %v229 = vunpack.c.l.b16 %v193
        %v230 = vunpack.c.l.b16 %v194
        %v231 = vunpack.c.l.b16 %v195
        %v232 = vunpack.c.l.b16 %v196
        %v233 = vunpack.c.l.b16 %v197
        %v234 = vunpack.c.l.b16 %v198
        %v235 = vunpack.c.l.b16 %v199
        %v236 = vunpack.c.l.b16 %v200
        %v237 = vunpack.c.l.b16 %v201
        %v238 = vunpack.c.l.b16 %v202
        %v239 = vunpack.c.l.b16 %v203
        %v240 = vpack.c.b16 %v225, %v224
        %v241 = vpack.c.b16 %v227, %v226
        %v242 = vpack.c.b16 %v229, %v228
        %v243 = vpack.c.b16 %v231, %v230
        %v244 = vpack.c.b16 %v233, %v232
        %v245 = vpack.c.b16 %v235, %v234
        %v246 = vpack.c.b16 %v237, %v236
        %v247 = vpack.c.b16 %v239, %v238
        %256 = vmatprep.subr.bf16.mxu0 0
        %257 = vmatpush1.bf16.msra.mxu0 %v240
        %258 = vmatprep.subr.bf16.mxu0 0
        %259 = vmatpush1.bf16.msra.mxu0 %v241
        %260 = vmatprep.subr.bf16.mxu0 0
        %261 = vmatpush1.bf16.msra.mxu0 %v242
        %262 = vmatprep.subr.bf16.mxu0 0
        %263 = vmatpush1.bf16.msra.mxu0 %v243
        %264 = vmatprep.subr.bf16.mxu0 0
        %265 = vmatpush1.bf16.msra.mxu0 %v244
        %266 = vmatprep.subr.bf16.mxu0 0
        %267 = vmatpush1.bf16.msra.mxu0 %v245
        %268 = vmatprep.subr.bf16.mxu0 0
        %269 = vmatpush1.bf16.msra.mxu0 %v246
        %270 = vmatprep.subr.bf16.mxu0 0
        %271 = vmatpush1.bf16.msra.mxu0 %v247
        %272 = vmatprep.subr.bf16.mxu0 0
        %273 = vmatpush1.bf16.msra.mxu0 0
        %274 = vmatprep.subr.bf16.mxu0 0
        %275 = vmatpush1.bf16.msra.mxu0 0
        %276 = vmatprep.subr.bf16.mxu0 0
        %277 = vmatpush1.bf16.msra.mxu0 0
        %278 = vmatprep.subr.bf16.mxu0 0
        %279 = vmatpush1.bf16.msra.mxu0 0
        %280 = vmatprep.subr.bf16.mxu0 0
        %281 = vmatpush1.bf16.msra.mxu0 0
        %282 = vmatprep.subr.bf16.mxu0 0
        %283 = vmatpush1.bf16.msra.mxu0 0
        %284 = vmatprep.subr.bf16.mxu0 0
        %285 = vmatpush1.bf16.msra.mxu0 0
        %286 = vmatprep.subr.bf16.mxu0 0
        %287 = vmatpush1.bf16.msra.mxu0 0
        %288 = vmatprep.mubr.bf16.mxu0 0
        %289 = vmatmul.mubr.bf16.gmra.mrb[0].mxu0 %v186
        %v290 = vpop.f32.mrb[0].mxu0
        %v291 = vadd.f32 %v207, %v290
        %v292 = vpop.f32.mrb[0].mxu0
        %v293 = vpop.f32.mrb[0].mxu0
        %v294 = vadd.f32 %v207, %v293
        %v295 = vpop.f32.mrb[0].mxu0
        %296 = vmatprep.mubr.bf16.mxu0 0
        %297 = vmatmul.mubr.bf16.gmra.mrb[0].mxu0 %v187
        %v298 = vpop.f32.mrb[0].mxu0
        %v299 = vadd.f32 %v207, %v298
        %v300 = vpop.f32.mrb[0].mxu0
        %v301 = vpop.f32.mrb[0].mxu0
        %v302 = vadd.f32 %v207, %v301
        %v303 = vpop.f32.mrb[0].mxu0
        %304 = vdwg.mxu0
        %v305 = vmax.f32 %v291, 0.0
        %v306 = vmax.f32 %v294, 0.0
        %v307 = vmax.f32 %v299, 0.0
        %v308 = vmax.f32 %v302, 0.0
        %v309 = vpack.c.bf16 %v306, %v305
        %v310 = vpack.c.bf16 %v308, %v307
        %v311 = vld [vmem:[#allocation3 + $0x40] sm:$0xf]
        %v312 = vld [vmem:[#allocation3 + $0x44] sm:$0xf]
        %v313 = vld [vmem:[#allocation3 + $0x48] sm:$0xf]
        %v314 = vld [vmem:[#allocation3 + $0x4c] sm:$0xf]
        %v315 = vld [vmem:[#allocation3 + $0x50] sm:$0xf]
        %v316 = vld [vmem:[#allocation3 + $0x54] sm:$0xf]
        %v317 = vld [vmem:[#allocation3 + $0x58] sm:$0xf]
        %v318 = vld [vmem:[#allocation3 + $0x5c] sm:$0xf]
        %v319 = vld [vmem:[#allocation3 + $0x60] sm:$0xf]
        %v320 = vld [vmem:[#allocation3 + $0x64] sm:$0xf]
        %v321 = vld [vmem:[#allocation3 + $0x68] sm:$0xf]
        %v322 = vld [vmem:[#allocation3 + $0x6c] sm:$0xf]
        %v323 = vld [vmem:[#allocation3 + $0x70] sm:$0xf]
        %v324 = vld [vmem:[#allocation3 + $0x74] sm:$0xf]
        %v325 = vld [vmem:[#allocation3 + $0x78] sm:$0xf]
        %v326 = vld [vmem:[#allocation3 + $0x7c] sm:$0xf]
        %v327 = vlaneseq
        %v328 = vshrl.u32 %v327, 7
        %v329 = vsub.s32 1, %v328
        %v330 = vrot.slane %v164, %v329
        %v347 = vunpack.c.l.b16 %v311
        %v348 = vunpack.c.l.b16 %v312
        %v349 = vunpack.c.l.b16 %v313
        %v350 = vunpack.c.l.b16 %v314
        %v351 = vunpack.c.l.b16 %v315
        %v352 = vunpack.c.l.b16 %v316
        %v353 = vunpack.c.l.b16 %v317
        %v354 = vunpack.c.l.b16 %v318
        %v355 = vunpack.c.l.b16 %v319
        %v356 = vunpack.c.l.b16 %v320
        %v357 = vunpack.c.l.b16 %v321
        %v358 = vunpack.c.l.b16 %v322
        %v359 = vunpack.c.l.b16 %v323
        %v360 = vunpack.c.l.b16 %v324
        %v361 = vunpack.c.l.b16 %v325
        %v362 = vunpack.c.l.b16 %v326
        %v363 = vpack.c.b16 %v348, %v347
        %v364 = vpack.c.b16 %v350, %v349
        %v365 = vpack.c.b16 %v352, %v351
        %v366 = vpack.c.b16 %v354, %v353
        %v367 = vpack.c.b16 %v356, %v355
        %v368 = vpack.c.b16 %v358, %v357
        %v369 = vpack.c.b16 %v360, %v359
        %v370 = vpack.c.b16 %v362, %v361
        %379 = vmatprep.subr.bf16.mxu0 0
        %380 = vmatpush1.bf16.msra.mxu0 %v363
        %381 = vmatprep.subr.bf16.mxu0 0
        %382 = vmatpush1.bf16.msra.mxu0 %v364
        %383 = vmatprep.subr.bf16.mxu0 0
        %384 = vmatpush1.bf16.msra.mxu0 %v365
        %385 = vmatprep.subr.bf16.mxu0 0
        %386 = vmatpush1.bf16.msra.mxu0 %v366
        %387 = vmatprep.subr.bf16.mxu0 0
        %388 = vmatpush1.bf16.msra.mxu0 %v367
        %389 = vmatprep.subr.bf16.mxu0 0
        %390 = vmatpush1.bf16.msra.mxu0 %v368
        %391 = vmatprep.subr.bf16.mxu0 0
        %392 = vmatpush1.bf16.msra.mxu0 %v369
        %393 = vmatprep.subr.bf16.mxu0 0
        %394 = vmatpush1.bf16.msra.mxu0 %v370
        %395 = vmatprep.subr.bf16.mxu0 0
        %396 = vmatpush1.bf16.msra.mxu0 0
        %397 = vmatprep.subr.bf16.mxu0 0
        %398 = vmatpush1.bf16.msra.mxu0 0
        %399 = vmatprep.subr.bf16.mxu0 0
        %400 = vmatpush1.bf16.msra.mxu0 0
        %401 = vmatprep.subr.bf16.mxu0 0
        %402 = vmatpush1.bf16.msra.mxu0 0
        %403 = vmatprep.subr.bf16.mxu0 0
        %404 = vmatpush1.bf16.msra.mxu0 0
        %405 = vmatprep.subr.bf16.mxu0 0
        %406 = vmatpush1.bf16.msra.mxu0 0
        %407 = vmatprep.subr.bf16.mxu0 0
        %408 = vmatpush1.bf16.msra.mxu0 0
        %409 = vmatprep.subr.bf16.mxu0 0
        %410 = vmatpush1.bf16.msra.mxu0 0
        %411 = vmatprep.mubr.bf16.mxu0 0
        %412 = vmatmul.mubr.bf16.gmra.mrb[0].mxu0 %v309
        %v413 = vpop.f32.mrb[0].mxu0
        %v414 = vadd.f32 %v330, %v413
        %v415 = vpop.f32.mrb[0].mxu0
        %v416 = vpop.f32.mrb[0].mxu0
        %v417 = vadd.f32 %v330, %v416
        %v418 = vpop.f32.mrb[0].mxu0
        %419 = vmatprep.mubr.bf16.mxu0 0
        %420 = vmatmul.mubr.bf16.gmra.mrb[0].mxu0 %v310
        %v421 = vpop.f32.mrb[0].mxu0
        %v422 = vadd.f32 %v330, %v421
        %v423 = vpop.f32.mrb[0].mxu0
        %v424 = vpop.f32.mrb[0].mxu0
        %v425 = vadd.f32 %v330, %v424
        %v426 = vpop.f32.mrb[0].mxu0
        %427 = vdwg.mxu0
        %v428 = vmax.f32 %v414, 0.0
        %v429 = vmax.f32 %v417, 0.0
        %v430 = vmax.f32 %v422, 0.0
        %v431 = vmax.f32 %v425, 0.0
        %v432 = vpack.c.bf16 %v429, %v428
        %v433 = vpack.c.bf16 %v431, %v430
        %v434 = vld [vmem:[#allocation3 + $0x80] sm:$0xf]
        %v435 = vld [vmem:[#allocation3 + $0x84] sm:$0xf]
        %v436 = vld [vmem:[#allocation3 + $0x88] sm:$0xf]
        %v437 = vld [vmem:[#allocation3 + $0x8c] sm:$0xf]
        %v438 = vld [vmem:[#allocation3 + $0x90] sm:$0xf]
        %v439 = vld [vmem:[#allocation3 + $0x94] sm:$0xf]
        %v440 = vld [vmem:[#allocation3 + $0x98] sm:$0xf]
        %v441 = vld [vmem:[#allocation3 + $0x9c] sm:$0xf]
        %v442 = vld [vmem:[#allocation3 + $0xa0] sm:$0xf]
        %v443 = vld [vmem:[#allocation3 + $0xa4] sm:$0xf]
        %v444 = vld [vmem:[#allocation3 + $0xa8] sm:$0xf]
        %v445 = vld [vmem:[#allocation3 + $0xac] sm:$0xf]
        %v446 = vld [vmem:[#allocation3 + $0xb0] sm:$0xf]
        %v447 = vld [vmem:[#allocation3 + $0xb4] sm:$0xf]
        %v448 = vld [vmem:[#allocation3 + $0xb8] sm:$0xf]
        %v449 = vld [vmem:[#allocation3 + $0xbc] sm:$0xf]
        %v450 = vlaneseq
        %v451 = vshrl.u32 %v450, 7
        %v452 = vsub.s32 2, %v451
        %v453 = vrot.slane %v164, %v452
        %v470 = vunpack.c.l.b16 %v434
        %v471 = vunpack.c.l.b16 %v435
        %v472 = vunpack.c.l.b16 %v436
        %v473 = vunpack.c.l.b16 %v437
        %v474 = vunpack.c.l.b16 %v438
        %v475 = vunpack.c.l.b16 %v439
        %v476 = vunpack.c.l.b16 %v440
        %v477 = vunpack.c.l.b16 %v441
        %v478 = vunpack.c.l.b16 %v442
        %v479 = vunpack.c.l.b16 %v443
        %v480 = vunpack.c.l.b16 %v444
        %v481 = vunpack.c.l.b16 %v445
        %v482 = vunpack.c.l.b16 %v446
        %v483 = vunpack.c.l.b16 %v447
        %v484 = vunpack.c.l.b16 %v448
        %v485 = vunpack.c.l.b16 %v449
        %v486 = vpack.c.b16 %v471, %v470
        %v487 = vpack.c.b16 %v473, %v472
        %v488 = vpack.c.b16 %v475, %v474
        %v489 = vpack.c.b16 %v477, %v476
        %v490 = vpack.c.b16 %v479, %v478
        %v491 = vpack.c.b16 %v481, %v480
        %v492 = vpack.c.b16 %v483, %v482
        %v493 = vpack.c.b16 %v485, %v484
        %502 = vmatprep.subr.bf16.mxu0 0
        %503 = vmatpush1.bf16.msra.mxu0 %v486
        %504 = vmatprep.subr.bf16.mxu0 0
        %505 = vmatpush1.bf16.msra.mxu0 %v487
        %506 = vmatprep.subr.bf16.mxu0 0
        %507 = vmatpush1.bf16.msra.mxu0 %v488
        %508 = vmatprep.subr.bf16.mxu0 0
        %509 = vmatpush1.bf16.msra.mxu0 %v489
        %510 = vmatprep.subr.bf16.mxu0 0
        %511 = vmatpush1.bf16.msra.mxu0 %v490
        %512 = vmatprep.subr.bf16.mxu0 0
        %513 = vmatpush1.bf16.msra.mxu0 %v491
        %514 = vmatprep.subr.bf16.mxu0 0
        %515 = vmatpush1.bf16.msra.mxu0 %v492
        %516 = vmatprep.subr.bf16.mxu0 0
        %517 = vmatpush1.bf16.msra.mxu0 %v493
        %518 = vmatprep.subr.bf16.mxu0 0
        %519 = vmatpush1.bf16.msra.mxu0 0
        %520 = vmatprep.subr.bf16.mxu0 0
        %521 = vmatpush1.bf16.msra.mxu0 0
        %522 = vmatprep.subr.bf16.mxu0 0
        %523 = vmatpush1.bf16.msra.mxu0 0
        %524 = vmatprep.subr.bf16.mxu0 0
        %525 = vmatpush1.bf16.msra.mxu0 0
        %526 = vmatprep.subr.bf16.mxu0 0
        %527 = vmatpush1.bf16.msra.mxu0 0
        %528 = vmatprep.subr.bf16.mxu0 0
        %529 = vmatpush1.bf16.msra.mxu0 0
        %530 = vmatprep.subr.bf16.mxu0 0
        %531 = vmatpush1.bf16.msra.mxu0 0
        %532 = vmatprep.subr.bf16.mxu0 0
        %533 = vmatpush1.bf16.msra.mxu0 0
        %534 = vmatprep.mubr.bf16.mxu0 0
        %535 = vmatmul.mubr.bf16.gmra.mrb[0].mxu0 %v432
        %v536 = vpop.f32.mrb[0].mxu0
        %v537 = vadd.f32 %v453, %v536
        %v538 = vpop.f32.mrb[0].mxu0
        %v539 = vpop.f32.mrb[0].mxu0
        %v540 = vadd.f32 %v453, %v539
        %v541 = vpop.f32.mrb[0].mxu0
        %542 = vmatprep.mubr.bf16.mxu0 0
        %543 = vmatmul.mubr.bf16.gmra.mrb[0].mxu0 %v433
        %v544 = vpop.f32.mrb[0].mxu0
        %v545 = vadd.f32 %v453, %v544
        %v546 = vpop.f32.mrb[0].mxu0
        %v547 = vpop.f32.mrb[0].mxu0
        %v548 = vadd.f32 %v453, %v547
        %v549 = vpop.f32.mrb[0].mxu0
        %550 = vdwg.mxu0
        %v551 = vmax.f32 %v537, 0.0
        %v552 = vmax.f32 %v540, 0.0
        %v553 = vmax.f32 %v545, 0.0
        %v554 = vmax.f32 %v548, 0.0
        %v555 = vpack.c.bf16 %v552, %v551
        %v556 = vpack.c.bf16 %v554, %v553
        %v557 = vld [vmem:[#allocation3 + $0xc0] sm:$0xf]
        %v558 = vld [vmem:[#allocation3 + $0xc4] sm:$0xf]
        %v559 = vld [vmem:[#allocation3 + $0xc8] sm:$0xf]
        %v560 = vld [vmem:[#allocation3 + $0xcc] sm:$0xf]
        %v561 = vld [vmem:[#allocation3 + $0xd0] sm:$0xf]
        %v562 = vld [vmem:[#allocation3 + $0xd4] sm:$0xf]
        %v563 = vld [vmem:[#allocation3 + $0xd8] sm:$0xf]
        %v564 = vld [vmem:[#allocation3 + $0xdc] sm:$0xf]
        %v565 = vld [vmem:[#allocation3 + $0xe0] sm:$0xf]
        %v566 = vld [vmem:[#allocation3 + $0xe4] sm:$0xf]
        %v567 = vld [vmem:[#allocation3 + $0xe8] sm:$0xf]
        %v568 = vld [vmem:[#allocation3 + $0xec] sm:$0xf]
        %v569 = vld [vmem:[#allocation3 + $0xf0] sm:$0xf]
        %v570 = vld [vmem:[#allocation3 + $0xf4] sm:$0xf]
        %v571 = vld [vmem:[#allocation3 + $0xf8] sm:$0xf]
        %v572 = vld [vmem:[#allocation3 + $0xfc] sm:$0xf]
        %v573 = vlaneseq
        %v574 = vshrl.u32 %v573, 7
        %v575 = vsub.s32 3, %v574
        %v576 = vrot.slane %v164, %v575
        %v593 = vunpack.c.l.b16 %v557
        %v594 = vunpack.c.l.b16 %v558
        %v595 = vunpack.c.l.b16 %v559
        %v596 = vunpack.c.l.b16 %v560
        %v597 = vunpack.c.l.b16 %v561
        %v598 = vunpack.c.l.b16 %v562
        %v599 = vunpack.c.l.b16 %v563
        %v600 = vunpack.c.l.b16 %v564
        %v601 = vunpack.c.l.b16 %v565
        %v602 = vunpack.c.l.b16 %v566
        %v603 = vunpack.c.l.b16 %v567
        %v604 = vunpack.c.l.b16 %v568
        %v605 = vunpack.c.l.b16 %v569
        %v606 = vunpack.c.l.b16 %v570
        %v607 = vunpack.c.l.b16 %v571
        %v608 = vunpack.c.l.b16 %v572
        %v609 = vpack.c.b16 %v594, %v593
        %v610 = vpack.c.b16 %v596, %v595
        %v611 = vpack.c.b16 %v598, %v597
        %v612 = vpack.c.b16 %v600, %v599
        %v613 = vpack.c.b16 %v602, %v601
        %v614 = vpack.c.b16 %v604, %v603
        %v615 = vpack.c.b16 %v606, %v605
        %v616 = vpack.c.b16 %v608, %v607
        %625 = vmatprep.subr.bf16.mxu0 0
        %626 = vmatpush1.bf16.msra.mxu0 %v609
        %627 = vmatprep.subr.bf16.mxu0 0
        %628 = vmatpush1.bf16.msra.mxu0 %v610
        %629 = vmatprep.subr.bf16.mxu0 0
        %630 = vmatpush1.bf16.msra.mxu0 %v611
        %631 = vmatprep.subr.bf16.mxu0 0
        %632 = vmatpush1.bf16.msra.mxu0 %v612
        %633 = vmatprep.subr.bf16.mxu0 0
        %634 = vmatpush1.bf16.msra.mxu0 %v613
        %635 = vmatprep.subr.bf16.mxu0 0
        %636 = vmatpush1.bf16.msra.mxu0 %v614
        %637 = vmatprep.subr.bf16.mxu0 0
        %638 = vmatpush1.bf16.msra.mxu0 %v615
        %639 = vmatprep.subr.bf16.mxu0 0
        %640 = vmatpush1.bf16.msra.mxu0 %v616
        %641 = vmatprep.subr.bf16.mxu0 0
        %642 = vmatpush1.bf16.msra.mxu0 0
        %643 = vmatprep.subr.bf16.mxu0 0
        %644 = vmatpush1.bf16.msra.mxu0 0
        %645 = vmatprep.subr.bf16.mxu0 0
        %646 = vmatpush1.bf16.msra.mxu0 0
        %647 = vmatprep.subr.bf16.mxu0 0
        %648 = vmatpush1.bf16.msra.mxu0 0
        %649 = vmatprep.subr.bf16.mxu0 0
        %650 = vmatpush1.bf16.msra.mxu0 0
        %651 = vmatprep.subr.bf16.mxu0 0
        %652 = vmatpush1.bf16.msra.mxu0 0
        %653 = vmatprep.subr.bf16.mxu0 0
        %654 = vmatpush1.bf16.msra.mxu0 0
        %655 = vmatprep.subr.bf16.mxu0 0
        %656 = vmatpush1.bf16.msra.mxu0 0
        %657 = vmatprep.mubr.bf16.mxu0 0
        %658 = vmatmul.mubr.bf16.gmra.mrb[0].mxu0 %v555
        %v659 = vpop.f32.mrb[0].mxu0
        %v660 = vadd.f32 %v576, %v659
        %v661 = vpop.f32.mrb[0].mxu0
        %v662 = vpop.f32.mrb[0].mxu0
        %v663 = vadd.f32 %v576, %v662
        %v664 = vpop.f32.mrb[0].mxu0
        %665 = vmatprep.mubr.bf16.mxu0 0
        %666 = vmatmul.mubr.bf16.gmra.mrb[0].mxu0 %v556
        %v667 = vpop.f32.mrb[0].mxu0
        %v668 = vadd.f32 %v576, %v667
        %v669 = vpop.f32.mrb[0].mxu0
        %v670 = vpop.f32.mrb[0].mxu0
        %v671 = vadd.f32 %v576, %v670
        %v672 = vpop.f32.mrb[0].mxu0
        %673 = vdwg.mxu0
        %vm674 = vcmask 64512
        %675 = vst.msk [vmem:[%s160] sm:$0xff] %vm674, %v660
        %676 = vst.msk [vmem:[%s160 + $0x8] sm:$0xff] %vm674, %v663
        %677 = vst.msk [vmem:[%s160 + $0x10] sm:$0xff] %vm674, %v668
        %678 = vst.msk [vmem:[%s160 + $0x18] sm:$0xff] %vm674, %v671
        %s679 = smul.u32 4, %s14
        %p680 = scmp.lt.s32.totalorder %s679, 7
        %s681 = scalar_select %p680, %s679, 7
        %s682 = smul.addr %s681, 8
        %s683 = scalar_lea.vmem %s2, %s682
        // Predicated region
        $region33: #{tpu_custom_call.1} parent=27 // pred_check
          %p684 = pneg %p79
        $region34: #{tpu_custom_call.1} parent=27 // pred_check_branch
          %686 = sbr.rel (%p684) target = $region36
        $region35: #{tpu_custom_call.1} parent=27 // pred_region
          %s687 = smul.u32 4, %s14
        $region36: #{tpu_custom_call.1} parent=27 // pred_fallthru
          _
      $region28: #{tpu_custom_call.1} parent=5 // pred_fallthru
        _
      %p688 = scmp.le.s32.totalorder 2, %s9
      // Predicated region
      $region37: #{tpu_custom_call.1} parent=5 // pred_check
        %p689 = pneg %p688
      $region38: #{tpu_custom_call.1} parent=5 // pred_check_branch
        %691 = sbr.rel (%p689) target = $region40
      $region39: #{tpu_custom_call.1} parent=5 // pred_region
        %s692 = ssub.s32 %s9, 2
        // Predicated region
        $region41: #{tpu_custom_call.1} parent=39 // pred_check
          %p693 = pneg %p85
        $region42: #{tpu_custom_call.1} parent=39 // pred_check_branch
          %695 = sbr.rel (%p693) target = $region44
        $region43: #{tpu_custom_call.1} parent=39 // pred_region
          %s696 = smul.u32 4, %s15
          %p697 = scmp.lt.s32.totalorder %s696, 7
          %s698 = scalar_select %p697, %s696, 7
          %s699 = smul.addr %s698, 8
          %s700 = scalar_lea.vmem %s2, %s699
        $region44: #{tpu_custom_call.1} parent=39 // pred_fallthru
          _
      $region40: #{tpu_custom_call.1} parent=5 // pred_fallthru
        _
    $region6: #{tpu_custom_call.1} parent=1 // loop_footer
      %s13 = sadd.s32 1, %s9
    $region7: #{tpu_custom_call.1} parent=1 // loop_footer_branch
      %8 = sbr.rel target = $region3
    $region8: #{tpu_custom_call.1} parent=1 // loop_exit
      _
    %701 = vsyncpa [#allocation4], 1
    %s702 = scalar_lea.sflag [#allocation4], 1
    %703 = vsyncpa %s702, 1

</llo_original>
